<compile_context>
chip_gen: v6e
topology: v6e:2x2x1
jax: 0.10.0
libtpu: 0.0.40
codegen_flags: <defaults>
</compile_context>

<pallas_src>
import functools

import jax
import jax.numpy as jnp
from jax.experimental import pallas as pl
from jax.experimental.pallas import tpu as pltpu

_LANES = 128
_NEG_BIAS = -1e30   # bias for padded output classes -> exp(logit - m) == 0


def _round_up(n, m):
    return -(-n // m) * m


def _sigmoid(z):
    # single EUP transcendental instead of exp + full-precision divide
    return 0.5 * (jnp.tanh(0.5 * z) + 1.0)


def fcnet_kernel(x_ref, w1_ref, b1_ref, w2_ref, b2_ref, w3_ref, b3_ref,
                 wf_ref, bf_ref, o_ref, *, matmul_dtype):
    x = x_ref[...]

    def dense(a, w_ref, b_ref):
        # bf16 (or requested dtype) MXU inputs, f32 accumulation, f32 bias add
        return (jnp.dot(a.astype(matmul_dtype), w_ref[...],
                        preferred_element_type=jnp.float32) + b_ref[...])

    # dense1 + sigmoid   (drop1 -> identity in eval/inference mode)
    h = _sigmoid(dense(x, w1_ref, b1_ref))
    # dense2 + sigmoid   (drop2 -> identity in eval/inference mode)
    h = _sigmoid(dense(h, w2_ref, b2_ref))
    # dense3 + sigmoid
    h = _sigmoid(dense(h, w3_ref, b3_ref))

    # Final linear over the 128-lane padded class dim, numerically stable
    # softmax; padded classes carry bias -1e30 so they contribute exactly 0.
    logits = dense(h, wf_ref, bf_ref)                     # [tb, 128] f32
    m = jnp.max(logits, axis=-1, keepdims=True)
    e = jnp.exp(logits - m)
    s = jnp.sum(e, axis=-1, keepdims=True)
    inv = pl.reciprocal(s, approx=True)                   # EUP, not a VPU divide
    # Store only the real classes: narrow (tb, n_out) block -> 64x less writeback.
    o_ref[...] = e[:, : o_ref.shape[-1]] * inv
    # TODO(synk): training-mode dropout (random masking) not implemented; eval
    # semantics (identity) are used, matching module.eval() behavior.


def fcnet_forward(x, params, *, tb=None, matmul_dtype=jnp.bfloat16):
    """Fused FCNet forward. x: [B, n_input] f32 -> [B, 2] f32 probabilities."""
    w1, b1, w2, b2, w3, b3, wf, bf = params
    B, F = x.shape
    n_out = wf.shape[1]  # 2

    # --- zero-pad hidden widths and the class dim to 128-lane multiples ------
    h1 = _round_up(w1.shape[1], _LANES)
    h2 = _round_up(w2.shape[1], _LANES)
    h3 = _round_up(w3.shape[1], _LANES)
    oc = _round_up(n_out, _LANES)

    def pad_w(w, rows, cols):
        return jnp.zeros((rows, cols), w.dtype).at[:w.shape[0], :w.shape[1]].set(w)

    def pad_b(b, cols, fill=0.0):
        return jnp.full((1, cols), fill, jnp.float32).at[:, :b.shape[1]].set(b)

    w1p, b1p = pad_w(w1, F,  h1), pad_b(b1, h1)
    w2p, b2p = pad_w(w2, h1, h2), pad_b(b2, h2)
    w3p, b3p = pad_w(w3, h2, h3), pad_b(b3, h3)
    wfp, bfp = pad_w(wf, h3, oc), pad_b(bf, oc, fill=_NEG_BIAS)

    # Pre-cast matmul weights once (halves weight DMA, native bf16 MXU path).
    # x itself stays f32: a wrapper-side bf16 convert would add an HBM pass.
    w1c, w2c, w3c, wfc = (w.astype(matmul_dtype) for w in (w1p, w2p, w3p, wfp))

    # Batch tile: one step for tiny B (per-step overhead dominates); otherwise
    # >=2 "parallel" steps (v7x dual-TC sharding), capped at 1024 rows/step.
    # VMEM per step at these shapes is well under 1 MiB, fine on every gen.
    if tb is None:
        B8 = max(8, _round_up(B, 8))
        if B8 <= 128:
            tb = B8
        elif B8 <= 2048:
            tb = _round_up(-(-B8 // 2), 8)
        else:
            tb = 1024

    B_pad = _round_up(B, tb)
    if B_pad != B:
        x = jnp.pad(x, ((0, B_pad - B), (0, 0)))  # zero rows: finite, discarded

    grid = (B_pad // tb,)
    rep = lambda i: (0, 0)  # weights/biases: same full block every tile

    kernel = functools.partial(fcnet_kernel, matmul_dtype=matmul_dtype)
    out = pl.pallas_call(
        kernel,
        out_shape=jax.ShapeDtypeStruct((B_pad, n_out), jnp.float32),
        grid=grid,
        in_specs=[
            # (If an xprof trace ever shows exposed input DMA at large tb, add
            #  pipeline_mode=pl.Buffered(3) here; gated on measurement.)
            pl.BlockSpec((tb, F), lambda i: (i, 0)),   # batch tile of X
            pl.BlockSpec(w1c.shape, rep),
            pl.BlockSpec(b1p.shape, rep),
            pl.BlockSpec(w2c.shape, rep),
            pl.BlockSpec(b2p.shape, rep),
            pl.BlockSpec(w3c.shape, rep),
            pl.BlockSpec(b3p.shape, rep),
            pl.BlockSpec(wfc.shape, rep),
            pl.BlockSpec(bfp.shape, rep),
        ],
        out_specs=pl.BlockSpec((tb, n_out), lambda i: (i, 0)),
        compiler_params=pltpu.CompilerParams(
            dimension_semantics=("parallel",)),
    )(x, w1c, b1p, w2c, b2p, w3c, b3p, wfc, bfp)

    return out[:B]


def init_params(key, n_input, n_units):
    """Deterministic init mimicking nn.Linear's U(-1/sqrt(fan_in), 1/sqrt(fan_in))."""
    dims = [n_input, n_units[0], n_units[1], n_units[2], 2]
    params = []
    for d_in, d_out in zip(dims[:-1], dims[1:]):
        key, kw, kb = jax.random.split(key, 3)
        bound = 1.0 / jnp.sqrt(d_in)
        w = jax.random.uniform(kw, (d_in, d_out), jnp.float32, -bound, bound)
        b = jax.random.uniform(kb, (1, d_out), jnp.float32, -bound, bound)
        params += [w, b]
    return tuple(params)


def fcnet_ref(x, params, matmul_dtype=jnp.float32):
    """Pure-JAX reference with a matching dtype flow, for sanity checking."""
    w1, b1, w2, b2, w3, b3, wf, bf = params

    def dense(a, w, b):
        return (jnp.dot(a.astype(matmul_dtype), w.astype(matmul_dtype),
                        preferred_element_type=jnp.float32) + b)

    h = _sigmoid(dense(x, w1, b1))
    h = _sigmoid(dense(h, w2, b2))
    h = _sigmoid(dense(h, w3, b3))
    return jax.nn.softmax(dense(h, wf, bf), axis=-1)


if __name__ == "__main__":
    n_input = 32
    n_units = (64, 32, 16)

    key = jax.random.PRNGKey(0)
    kx, kp, kx2 = jax.random.split(key, 3)
    params = init_params(kp, n_input, n_units)

    # --- small batch: single grid step ------------------------------------
    B = 16
    x = jax.random.normal(kx, (B, n_input), jnp.float32)
    out = jax.block_until_ready(fcnet_forward(x, params))

    ref_matched = fcnet_ref(x, params, matmul_dtype=jnp.bfloat16)  # same dtype flow
    ref_f32 = fcnet_ref(x, params, matmul_dtype=jnp.float32)       # full precision

    assert out.shape == (B, 2)
    assert jnp.allclose(out, ref_matched, atol=5e-3, rtol=5e-3)
    assert jnp.allclose(out, ref_f32, atol=3e-2, rtol=3e-2)
    assert jnp.allclose(jnp.sum(out, axis=-1), 1.0, atol=1e-2)
    assert bool(jnp.all(jnp.isfinite(out)))

    # --- larger batch: exercises batch padding + >=2 parallel grid steps ---
    B2 = 300
    x2 = jax.random.normal(kx2, (B2, n_input), jnp.float32)
    out2 = jax.block_until_ready(fcnet_forward(x2, params))
    ref2 = fcnet_ref(x2, params, matmul_dtype=jnp.bfloat16)
    assert out2.shape == (B2, 2)
    assert jnp.allclose(out2, ref2, atol=5e-3, rtol=5e-3)
    assert jnp.allclose(jnp.sum(out2, axis=-1), 1.0, atol=1e-2)
    assert bool(jnp.all(jnp.isfinite(out2)))

    print("KERNEL_OK")
</pallas_src>

<mosaic_0001>
module attributes {stable_mosaic.version = 11 : i64} {
  func.func @fcnet_kernel(%arg0: i32, %arg1: memref<16x32xf32, #tpu.memory_space<vmem>>, %arg2: memref<32x128xbf16, #tpu.memory_space<vmem>>, %arg3: memref<1x128xf32, #tpu.memory_space<vmem>>, %arg4: memref<128x128xbf16, #tpu.memory_space<vmem>>, %arg5: memref<1x128xf32, #tpu.memory_space<vmem>>, %arg6: memref<128x128xbf16, #tpu.memory_space<vmem>>, %arg7: memref<1x128xf32, #tpu.memory_space<vmem>>, %arg8: memref<128x128xbf16, #tpu.memory_space<vmem>>, %arg9: memref<1x128xf32, #tpu.memory_space<vmem>>, %arg10: memref<16x2xf32, #tpu.memory_space<vmem>>) attributes {dimension_semantics = [#tpu.dimension_semantics<parallel>], iteration_bounds = array<i64: 1>, scalar_prefetch = 0 : i64, scratch_operands = 0 : i64, tpu.core_type = #tpu.core_type<tc>, window_params = [{transform_indices = @transform_0, window_bounds = array<i64: 16, 32>}, {pipeline_mode = #tpu.pipeline_mode<synchronous>, transform_indices = @transform_1, window_bounds = array<i64: 32, 128>}, {pipeline_mode = #tpu.pipeline_mode<synchronous>, transform_indices = @transform_2, window_bounds = array<i64: 1, 128>}, {pipeline_mode = #tpu.pipeline_mode<synchronous>, transform_indices = @transform_3, window_bounds = array<i64: 128, 128>}, {pipeline_mode = #tpu.pipeline_mode<synchronous>, transform_indices = @transform_4, window_bounds = array<i64: 1, 128>}, {pipeline_mode = #tpu.pipeline_mode<synchronous>, transform_indices = @transform_5, window_bounds = array<i64: 128, 128>}, {pipeline_mode = #tpu.pipeline_mode<synchronous>, transform_indices = @transform_6, window_bounds = array<i64: 1, 128>}, {pipeline_mode = #tpu.pipeline_mode<synchronous>, transform_indices = @transform_7, window_bounds = array<i64: 128, 128>}, {pipeline_mode = #tpu.pipeline_mode<synchronous>, transform_indices = @transform_8, window_bounds = array<i64: 1, 128>}, {transform_indices = @transform_9, window_bounds = array<i64: 16, 2>}]} {
    %c0 = arith.constant 0 : index
    %c0_0 = arith.constant 0 : index
    %0 = vector.load %arg1[%c0, %c0_0] : memref<16x32xf32, #tpu.memory_space<vmem>>, vector<16x32xf32>
    %1 = arith.truncf %0 : vector<16x32xf32> to vector<16x32xbf16>
    %c0_1 = arith.constant 0 : index
    %c0_2 = arith.constant 0 : index
    %2 = vector.load %arg2[%c0_1, %c0_2] : memref<32x128xbf16, #tpu.memory_space<vmem>>, vector<32x128xbf16>
    %cst = arith.constant dense<0.000000e+00> : vector<16x128xf32>
    %3 = tpu.matmul %1, %2, %cst {dimension_numbers = #tpu.dot_dimension_numbers<[1], [0], [0], [1], [0, 0, 1, 1], [], []>} : vector<16x32xbf16>, vector<32x128xbf16>, vector<16x128xf32> -> vector<16x128xf32>
    %c0_3 = arith.constant 0 : index
    %c0_4 = arith.constant 0 : index
    %4 = vector.load %arg3[%c0_3, %c0_4] : memref<1x128xf32, #tpu.memory_space<vmem>>, vector<1x128xf32>
    %5 = vector.broadcast %4 : vector<1x128xf32> to vector<16x128xf32>
    %6 = arith.addf %3, %5 : vector<16x128xf32>
    %cst_5 = arith.constant 5.000000e-01 : f32
    %7 = vector.broadcast %cst_5 : f32 to vector<16x128xf32>
    %8 = arith.mulf %7, %6 : vector<16x128xf32>
    %9 = math.tanh %8 : vector<16x128xf32>
    %cst_6 = arith.constant 1.000000e+00 : f32
    %10 = vector.broadcast %cst_6 : f32 to vector<16x128xf32>
    %11 = arith.addf %9, %10 : vector<16x128xf32>
    %cst_7 = arith.constant 5.000000e-01 : f32
    %12 = vector.broadcast %cst_7 : f32 to vector<16x128xf32>
    %13 = arith.mulf %12, %11 : vector<16x128xf32>
    %14 = arith.truncf %13 : vector<16x128xf32> to vector<16x128xbf16>
    %c0_8 = arith.constant 0 : index
    %c0_9 = arith.constant 0 : index
    %15 = vector.load %arg4[%c0_8, %c0_9] : memref<128x128xbf16, #tpu.memory_space<vmem>>, vector<128x128xbf16>
    %cst_10 = arith.constant dense<0.000000e+00> : vector<16x128xf32>
    %16 = tpu.matmul %14, %15, %cst_10 {dimension_numbers = #tpu.dot_dimension_numbers<[1], [0], [0], [1], [0, 0, 1, 1], [], []>} : vector<16x128xbf16>, vector<128x128xbf16>, vector<16x128xf32> -> vector<16x128xf32>
    %c0_11 = arith.constant 0 : index
    %c0_12 = arith.constant 0 : index
    %17 = vector.load %arg5[%c0_11, %c0_12] : memref<1x128xf32, #tpu.memory_space<vmem>>, vector<1x128xf32>
    %18 = vector.broadcast %17 : vector<1x128xf32> to vector<16x128xf32>
    %19 = arith.addf %16, %18 : vector<16x128xf32>
    %cst_13 = arith.constant 5.000000e-01 : f32
    %20 = vector.broadcast %cst_13 : f32 to vector<16x128xf32>
    %21 = arith.mulf %20, %19 : vector<16x128xf32>
    %22 = math.tanh %21 : vector<16x128xf32>
    %cst_14 = arith.constant 1.000000e+00 : f32
    %23 = vector.broadcast %cst_14 : f32 to vector<16x128xf32>
    %24 = arith.addf %22, %23 : vector<16x128xf32>
    %cst_15 = arith.constant 5.000000e-01 : f32
    %25 = vector.broadcast %cst_15 : f32 to vector<16x128xf32>
    %26 = arith.mulf %25, %24 : vector<16x128xf32>
    %27 = arith.truncf %26 : vector<16x128xf32> to vector<16x128xbf16>
    %c0_16 = arith.constant 0 : index
    %c0_17 = arith.constant 0 : index
    %28 = vector.load %arg6[%c0_16, %c0_17] : memref<128x128xbf16, #tpu.memory_space<vmem>>, vector<128x128xbf16>
    %cst_18 = arith.constant dense<0.000000e+00> : vector<16x128xf32>
    %29 = tpu.matmul %27, %28, %cst_18 {dimension_numbers = #tpu.dot_dimension_numbers<[1], [0], [0], [1], [0, 0, 1, 1], [], []>} : vector<16x128xbf16>, vector<128x128xbf16>, vector<16x128xf32> -> vector<16x128xf32>
    %c0_19 = arith.constant 0 : index
    %c0_20 = arith.constant 0 : index
    %30 = vector.load %arg7[%c0_19, %c0_20] : memref<1x128xf32, #tpu.memory_space<vmem>>, vector<1x128xf32>
    %31 = vector.broadcast %30 : vector<1x128xf32> to vector<16x128xf32>
    %32 = arith.addf %29, %31 : vector<16x128xf32>
    %cst_21 = arith.constant 5.000000e-01 : f32
    %33 = vector.broadcast %cst_21 : f32 to vector<16x128xf32>
    %34 = arith.mulf %33, %32 : vector<16x128xf32>
    %35 = math.tanh %34 : vector<16x128xf32>
    %cst_22 = arith.constant 1.000000e+00 : f32
    %36 = vector.broadcast %cst_22 : f32 to vector<16x128xf32>
    %37 = arith.addf %35, %36 : vector<16x128xf32>
    %cst_23 = arith.constant 5.000000e-01 : f32
    %38 = vector.broadcast %cst_23 : f32 to vector<16x128xf32>
    %39 = arith.mulf %38, %37 : vector<16x128xf32>
    %40 = arith.truncf %39 : vector<16x128xf32> to vector<16x128xbf16>
    %c0_24 = arith.constant 0 : index
    %c0_25 = arith.constant 0 : index
    %41 = vector.load %arg8[%c0_24, %c0_25] : memref<128x128xbf16, #tpu.memory_space<vmem>>, vector<128x128xbf16>
    %cst_26 = arith.constant dense<0.000000e+00> : vector<16x128xf32>
    %42 = tpu.matmul %40, %41, %cst_26 {dimension_numbers = #tpu.dot_dimension_numbers<[1], [0], [0], [1], [0, 0, 1, 1], [], []>} : vector<16x128xbf16>, vector<128x128xbf16>, vector<16x128xf32> -> vector<16x128xf32>
    %c0_27 = arith.constant 0 : index
    %c0_28 = arith.constant 0 : index
    %43 = vector.load %arg9[%c0_27, %c0_28] : memref<1x128xf32, #tpu.memory_space<vmem>>, vector<1x128xf32>
    %44 = vector.broadcast %43 : vector<1x128xf32> to vector<16x128xf32>
    %45 = arith.addf %42, %44 : vector<16x128xf32>
    %cst_29 = arith.constant dense<0xFF800000> : vector<16xf32>
    %46 = vector.multi_reduction <maximumf>, %45, %cst_29 [1] : vector<16x128xf32> to vector<16xf32>
    %47 = vector.shape_cast %46 : vector<16xf32> to vector<16x1xf32>
    %48 = vector.broadcast %47 : vector<16x1xf32> to vector<16x128xf32>
    %49 = arith.subf %45, %48 : vector<16x128xf32>
    %50 = math.exp %49 : vector<16x128xf32>
    %cst_30 = arith.constant dense<0.000000e+00> : vector<16xf32>
    %51 = vector.multi_reduction <add>, %50, %cst_30 [1] : vector<16x128xf32> to vector<16xf32>
    %52 = vector.shape_cast %51 : vector<16xf32> to vector<16x1xf32>
    %53 = tpu.reciprocal %52 {approx = true} : vector<16x1xf32> -> vector<16x1xf32>
    %54 = vector.extract_strided_slice %50 {offsets = [0, 0], sizes = [16, 2], strides = [1, 1]} : vector<16x128xf32> to vector<16x2xf32>
    %55 = vector.broadcast %53 : vector<16x1xf32> to vector<16x2xf32>
    %56 = arith.mulf %54, %55 : vector<16x2xf32>
    %c0_31 = arith.constant 0 : index
    %c0_32 = arith.constant 0 : index
    %57 = vector.load %arg10[%c0_31, %c0_32] : memref<16x2xf32, #tpu.memory_space<vmem>>, vector<16x2xf32>
    tpu.vector_store %arg10[%c0_31, %c0_32], %56 {strides = array<i32>} : memref<16x2xf32, #tpu.memory_space<vmem>>, vector<16x2xf32>,
    return
  }
  func.func @transform_0(%arg0: i32) -> (i32, i32) {
    %c0_i32 = arith.constant 0 : i32
    %c0_i32_0 = arith.constant 0 : i32
    return %arg0, %c0_i32 : i32, i32
  }
  func.func @transform_1(%arg0: i32) -> (i32, i32) {
    %c0_i32 = arith.constant 0 : i32
    %c0_i32_0 = arith.constant 0 : i32
    %c0_i32_1 = arith.constant 0 : i32
    return %c0_i32, %c0_i32_0 : i32, i32
  }
  func.func @transform_2(%arg0: i32) -> (i32, i32) {
    %c0_i32 = arith.constant 0 : i32
    %c0_i32_0 = arith.constant 0 : i32
    %c0_i32_1 = arith.constant 0 : i32
    return %c0_i32, %c0_i32_0 : i32, i32
  }
  func.func @transform_3(%arg0: i32) -> (i32, i32) {
    %c0_i32 = arith.constant 0 : i32
    %c0_i32_0 = arith.constant 0 : i32
    %c0_i32_1 = arith.constant 0 : i32
    return %c0_i32, %c0_i32_0 : i32, i32
  }
  func.func @transform_4(%arg0: i32) -> (i32, i32) {
    %c0_i32 = arith.constant 0 : i32
    %c0_i32_0 = arith.constant 0 : i32
    %c0_i32_1 = arith.constant 0 : i32
    return %c0_i32, %c0_i32_0 : i32, i32
  }
  func.func @transform_5(%arg0: i32) -> (i32, i32) {
    %c0_i32 = arith.constant 0 : i32
    %c0_i32_0 = arith.constant 0 : i32
    %c0_i32_1 = arith.constant 0 : i32
    return %c0_i32, %c0_i32_0 : i32, i32
  }
  func.func @transform_6(%arg0: i32) -> (i32, i32) {
    %c0_i32 = arith.constant 0 : i32
    %c0_i32_0 = arith.constant 0 : i32
    %c0_i32_1 = arith.constant 0 : i32
    return %c0_i32, %c0_i32_0 : i32, i32
  }
  func.func @transform_7(%arg0: i32) -> (i32, i32) {
    %c0_i32 = arith.constant 0 : i32
    %c0_i32_0 = arith.constant 0 : i32
    %c0_i32_1 = arith.constant 0 : i32
    return %c0_i32, %c0_i32_0 : i32, i32
  }
  func.func @transform_8(%arg0: i32) -> (i32, i32) {
    %c0_i32 = arith.constant 0 : i32
    %c0_i32_0 = arith.constant 0 : i32
    %c0_i32_1 = arith.constant 0 : i32
    return %c0_i32, %c0_i32_0 : i32, i32
  }
  func.func @transform_9(%arg0: i32) -> (i32, i32) {
    %c0_i32 = arith.constant 0 : i32
    %c0_i32_0 = arith.constant 0 : i32
    return %arg0, %c0_i32 : i32, i32
  }
}

</mosaic_0001>

<llo_original>
// kernel: tpu_custom_call.1
$region0: #{tpu_custom_call.1}
  #allocation0 [shape = 'u32[]', space=smem, size = 0x4, offset = 0x4, fixed_abs, tag = 'smem constant byte address 0x4 - core index']
  #allocation1 [shape = 'u32[144,128]{1,0:T(1,128)}', space=vmem, size = 0x12000, scoped, tag = 'internal scratch']
  %s0 = inlined_call_operand.hbm [shape: f32[16,32], index: 0, kind: input, shape index: {}]
  %s1 = inlined_call_operand.hbm [shape: bf16[32,128], index: 1, kind: input, shape index: {}]
  %s2 = inlined_call_operand.vmem [shape: f32[1,128], index: 2, kind: input, shape index: {}]
  %s3 = inlined_call_operand.hbm [shape: bf16[128,128], index: 3, kind: input, shape index: {}]
  %s4 = inlined_call_operand.vmem [shape: f32[1,128], index: 4, kind: input, shape index: {}]
  %s5 = inlined_call_operand.hbm [shape: bf16[128,128], index: 5, kind: input, shape index: {}]
  %s6 = inlined_call_operand.vmem [shape: f32[1,128], index: 6, kind: input, shape index: {}]
  %s7 = inlined_call_operand.hbm [shape: bf16[128,128], index: 7, kind: input, shape index: {}]
  %s8 = inlined_call_operand.vmem [shape: f32[1,128], index: 8, kind: input, shape index: {}]
  %s9 = inlined_call_operand.vmem [shape: f32[16,2], index: 9, kind: output, shape index: {}]
  %s10 = sld [smem:[#allocation0]]
  $region66: #{tpu_custom_call.1} parent=0
    _
  %s12 = ssub.s32 1, %s10
  %s13 = scalar_select 0, %s12, %s10
  $region1: #{tpu_custom_call.1} parent=0
    #allocation2 [shape = 'u8[8192]{0}', space=vmem, size = 0x2000, scoped, tag = 'input window, operand 0, single buffered']
    #allocation3 [shape = 's32[1]{0}', space=sflag, size = 0x4, scoped, tag = 'scoped memory for tpu_custom_call.1']
    #allocation4 [shape = 'u8[8192]{0}', space=vmem, size = 0x2000, scoped, tag = 'input window, operand 1, single buffered']
    #allocation5 [shape = 's32[1]{0}', space=sflag, size = 0x4, scoped, tag = 'scoped memory for tpu_custom_call.1']
    #allocation6 [shape = 'u8[32768]{0}', space=vmem, size = 0x8000, scoped, tag = 'input window, operand 3, single buffered']
    #allocation7 [shape = 'u8[32768]{0}', space=vmem, size = 0x8000, scoped, tag = 'input window, operand 5, single buffered']
    #allocation8 [shape = 's32[1]{0}', space=sflag, size = 0x4, scoped, tag = 'scoped memory for tpu_custom_call.1']
    #allocation9 [shape = 'u8[32768]{0}', space=vmem, size = 0x8000, scoped, tag = 'input window, operand 7, single buffered']
    %14 = vsyncpa [#allocation3], 0
    %15 = vsyncpa [#allocation5], 0
    %16 = vsyncpa [#allocation8], 0
    // Predicated region
    $region2: #{tpu_custom_call.1} parent=1 // pred_check
      _
    $region3: #{tpu_custom_call.1} parent=1 // pred_check_branch
      %18 = sbr.rel (0) target = $region5
    $region4: #{tpu_custom_call.1} parent=1 // pred_region
      %s20 = ssub.s32 256, 256
      %21 = vsyncadd [#allocation3], %s20
      %s22 = sshll.u32 [#allocation2], 4
      %s23 = int_to_ptr.vmem [resolvable:$true] %s22
      %28 = dma.hbm_to_vmem [thread:$0]  %s0, 256, %s23, [#allocation3], 128, 128, 8
    $region5: #{tpu_custom_call.1} parent=1 // pred_fallthru
      _
    // Predicated region
    $region6: #{tpu_custom_call.1} parent=1 // pred_check
      _
    $region7: #{tpu_custom_call.1} parent=1 // pred_check_branch
      %30 = sbr.rel (0) target = $region9
    $region8: #{tpu_custom_call.1} parent=1 // pred_region
      %s32 = ssub.s32 256, 256
      %33 = vsyncadd [#allocation5], %s32
      %s34 = sshll.u32 [#allocation4], 4
      %s35 = int_to_ptr.vmem [resolvable:$true] %s34
      %40 = dma.hbm_to_vmem [thread:$0]  %s1, 256, %s35, [#allocation5], 64, 64, 4
    $region9: #{tpu_custom_call.1} parent=1 // pred_fallthru
      _
    // Predicated region
    $region10: #{tpu_custom_call.1} parent=1 // pred_check
      _
    $region11: #{tpu_custom_call.1} parent=1 // pred_check_branch
      %42 = sbr.rel (0) target = $region13
    $region12: #{tpu_custom_call.1} parent=1 // pred_region
      _
    $region13: #{tpu_custom_call.1} parent=1 // pred_fallthru
      _
    // Predicated region
    $region14: #{tpu_custom_call.1} parent=1 // pred_check
      _
    $region15: #{tpu_custom_call.1} parent=1 // pred_check_branch
      %44 = sbr.rel (0) target = $region17
    $region16: #{tpu_custom_call.1} parent=1 // pred_region
      %s46 = ssub.s32 1024, 1024
      %47 = vsyncadd [#allocation5], %s46
      %s48 = sshll.u32 [#allocation6], 4
      %s49 = int_to_ptr.vmem [resolvable:$true] %s48
      %54 = dma.hbm_to_vmem [thread:$0]  %s3, 1024, %s49, [#allocation5], 64, 64, 4
    $region17: #{tpu_custom_call.1} parent=1 // pred_fallthru
      _
    // Predicated region
    $region18: #{tpu_custom_call.1} parent=1 // pred_check
      _
    $region19: #{tpu_custom_call.1} parent=1 // pred_check_branch
      %56 = sbr.rel (0) target = $region21
    $region20: #{tpu_custom_call.1} parent=1 // pred_region
      _
    $region21: #{tpu_custom_call.1} parent=1 // pred_fallthru
      _
    // Predicated region
    $region22: #{tpu_custom_call.1} parent=1 // pred_check
      _
    $region23: #{tpu_custom_call.1} parent=1 // pred_check_branch
      %58 = sbr.rel (0) target = $region25
    $region24: #{tpu_custom_call.1} parent=1 // pred_region
      %s60 = ssub.s32 1024, 1024
      %61 = vsyncadd [#allocation8], %s60
      %s62 = sshll.u32 [#allocation7], 4
      %s63 = int_to_ptr.vmem [resolvable:$true] %s62
      %68 = dma.hbm_to_vmem [thread:$0]  %s5, 1024, %s63, [#allocation8], 64, 64, 4
    $region25: #{tpu_custom_call.1} parent=1 // pred_fallthru
      _
    // Predicated region
    $region26: #{tpu_custom_call.1} parent=1 // pred_check
      _
    $region27: #{tpu_custom_call.1} parent=1 // pred_check_branch
      %70 = sbr.rel (0) target = $region29
    $region28: #{tpu_custom_call.1} parent=1 // pred_region
      _
    $region29: #{tpu_custom_call.1} parent=1 // pred_fallthru
      _
    // Predicated region
    $region30: #{tpu_custom_call.1} parent=1 // pred_check
      _
    $region31: #{tpu_custom_call.1} parent=1 // pred_check_branch
      %72 = sbr.rel (0) target = $region33
    $region32: #{tpu_custom_call.1} parent=1 // pred_region
      %s74 = ssub.s32 1024, 1024
      %75 = vsyncadd [#allocation8], %s74
      %s76 = sshll.u32 [#allocation9], 4
      %s77 = int_to_ptr.vmem [resolvable:$true] %s76
      %82 = dma.hbm_to_vmem [thread:$0]  %s7, 1024, %s77, [#allocation8], 64, 64, 4
    $region33: #{tpu_custom_call.1} parent=1 // pred_fallthru
      _
    // Predicated region
    $region34: #{tpu_custom_call.1} parent=1 // pred_check
      _
    $region35: #{tpu_custom_call.1} parent=1 // pred_check_branch
      %84 = sbr.rel (0) target = $region37
    $region36: #{tpu_custom_call.1} parent=1 // pred_region
      _
    $region37: #{tpu_custom_call.1} parent=1 // pred_fallthru
      _
    // Predicated region
    $region38: #{tpu_custom_call.1} parent=1 // pred_check
      _
    $region39: #{tpu_custom_call.1} parent=1 // pred_check_branch
      %86 = sbr.rel (0) target = $region41
    $region40: #{tpu_custom_call.1} parent=1 // pred_region
      %87 = dma.done [#allocation3], 256
    $region41: #{tpu_custom_call.1} parent=1 // pred_fallthru
      _
    // Predicated region
    $region42: #{tpu_custom_call.1} parent=1 // pred_check
      _
    $region43: #{tpu_custom_call.1} parent=1 // pred_check_branch
      %89 = sbr.rel (0) target = $region45
    $region44: #{tpu_custom_call.1} parent=1 // pred_region
      %90 = dma.done [#allocation5], 256
    $region45: #{tpu_custom_call.1} parent=1 // pred_fallthru
      _
    // Predicated region
    $region46: #{tpu_custom_call.1} parent=1 // pred_check
      _
    $region47: #{tpu_custom_call.1} parent=1 // pred_check_branch
      %92 = sbr.rel (0) target = $region49
    $region48: #{tpu_custom_call.1} parent=1 // pred_region
      %93 = dma.done [#allocation5], 1024
    $region49: #{tpu_custom_call.1} parent=1 // pred_fallthru
      _
    // Predicated region
    $region50: #{tpu_custom_call.1} parent=1 // pred_check
      _
    $region51: #{tpu_custom_call.1} parent=1 // pred_check_branch
      %95 = sbr.rel (0) target = $region53
    $region52: #{tpu_custom_call.1} parent=1 // pred_region
      %96 = dma.done [#allocation8], 1024
    $region53: #{tpu_custom_call.1} parent=1 // pred_fallthru
      _
    // Predicated region
    $region54: #{tpu_custom_call.1} parent=1 // pred_check
      _
    $region55: #{tpu_custom_call.1} parent=1 // pred_check_branch
      %98 = sbr.rel (0) target = $region57
    $region56: #{tpu_custom_call.1} parent=1 // pred_region
      %99 = dma.done [#allocation8], 1024
    $region57: #{tpu_custom_call.1} parent=1 // pred_fallthru
      _
    %v101 = vld [vmem:[#allocation2] sm:$0xff]
    %v102 = vld [vmem:[#allocation2 + $0x8] sm:$0xff]
    %v103 = vpack.c.bf16 %v102, %v101
    %v104 = vld [vmem:[#allocation4] sm:$0xf]
    %v105 = vld [vmem:[#allocation4 + $0x4] sm:$0xf]
    %v106 = vld [vmem:[#allocation4 + $0x8] sm:$0xf]
    %v107 = vld [vmem:[#allocation4 + $0xc] sm:$0xf]
    %v108 = vld [vmem:[%s2] sm:$0x1]
    %v110 = vlaneseq
    %v111 = vshrl.u32 %v110, 7
    %v112 = vsub.s32 0, %v111
    %v113 = vrot.slane %v108, %v112
    %v119 = vunpack.c.l.b16 %v104
    %v120 = vunpack.c.l.b16 %v105
    %v121 = vunpack.c.l.b16 %v106
    %v122 = vunpack.c.l.b16 %v107
    %v123 = vpack.c.b16 %v120, %v119
    %v124 = vpack.c.b16 %v122, %v121
    %vm127 = vcmask 261120
    %v129 = vsel %vm127, %v103, 0
    %131 = vmatprep.subr.bf16.mxu0 0
    %132 = vmatpush1.bf16.msra.mxu0 0
    %133 = vmatprep.subr.bf16.mxu0 0
    %134 = vmatpush1.bf16.msra.mxu0 0
    %135 = vmatprep.subr.bf16.mxu0 0
    %136 = vmatpush1.bf16.msra.mxu0 0
    %137 = vmatprep.subr.bf16.mxu0 0
    %138 = vmatpush1.bf16.msra.mxu0 0
    %139 = vmatprep.subr.bf16.mxu0 0
    %140 = vmatpush1.bf16.msra.mxu0 0
    %141 = vmatprep.subr.bf16.mxu0 0
    %142 = vmatpush1.bf16.msra.mxu0 0
    %143 = vmatprep.subr.bf16.mxu0 0
    %144 = vmatpush1.bf16.msra.mxu0 %v124
    %145 = vmatprep.subr.bf16.mxu0 0
    %146 = vmatpush1.bf16.msra.mxu0 %v123
    %147 = vmatprep.subr.bf16.mxu0 0
    %148 = vmatpush2.bf16.msra.mxu0 0
    %149 = vmatprep.subr.bf16.mxu0 0
    %150 = vmatpush2.bf16.msra.mxu0 0
    %151 = vmatprep.subr.bf16.mxu0 0
    %152 = vmatpush2.bf16.msra.mxu0 0
    %153 = vmatprep.subr.bf16.mxu0 0
    %154 = vmatpush2.bf16.msra.mxu0 0
    %155 = vmatprep.subr.bf16.mxu0 0
    %156 = vmatpush2.bf16.msra.mxu0 0
    %157 = vmatprep.subr.bf16.mxu0 0
    %158 = vmatpush2.bf16.msra.mxu0 0
    %159 = vmatprep.subr.bf16.mxu0 0
    %160 = vmatpush2.bf16.msra.mxu0 0
    %161 = vmatprep.subr.bf16.mxu0 0
    %162 = vmatpush2.bf16.msra.mxu0 0
    %163 = vmatprep.mubr.bf16.mxu0 0
    %164 = vmatmul.mubr.bf16.gmra.mxu0 %v129
    %v165 = vpop.f32.mrf.mxu0
    %v166 = vadd.f32 %v113, %v165
    %v167 = vpop.f32.mrf.mxu0
    %v168 = vpop.f32.mrf.mxu0
    %v169 = vadd.f32 %v113, %v168
    %v170 = vpop.f32.mrf.mxu0
    %171 = vdwg.mxu0
    %v172 = vmul.f32 %v166, 0.5
    %v173 = vmul.f32 %v169, 0.5
    %v174 = vtanh.pop %v172
    %v175 = vtanh.pop %v173
    %v176 = vadd.f32 %v174, 1.0
    %v177 = vadd.f32 %v175, 1.0
    %v178 = vmul.f32 %v176, 0.5
    %v179 = vmul.f32 %v177, 0.5
    %v180 = vpack.c.bf16 %v179, %v178
    %v181 = vld [vmem:[#allocation6] sm:$0xf]
    %v182 = vld [vmem:[#allocation6 + $0x4] sm:$0xf]
    %v183 = vld [vmem:[#allocation6 + $0x8] sm:$0xf]
    %v184 = vld [vmem:[#allocation6 + $0xc] sm:$0xf]
    %v185 = vld [vmem:[#allocation6 + $0x10] sm:$0xf]
    %v186 = vld [vmem:[#allocation6 + $0x14] sm:$0xf]
    %v187 = vld [vmem:[#allocation6 + $0x18] sm:$0xf]
    %v188 = vld [vmem:[#allocation6 + $0x1c] sm:$0xf]
    %v189 = vld [vmem:[#allocation6 + $0x20] sm:$0xf]
    %v190 = vld [vmem:[#allocation6 + $0x24] sm:$0xf]
    %v191 = vld [vmem:[#allocation6 + $0x28] sm:$0xf]
    %v192 = vld [vmem:[#allocation6 + $0x2c] sm:$0xf]
    %v193 = vld [vmem:[#allocation6 + $0x30] sm:$0xf]
    %v194 = vld [vmem:[#allocation6 + $0x34] sm:$0xf]
    %v195 = vld [vmem:[#allocation6 + $0x38] sm:$0xf]
    %v196 = vld [vmem:[#allocation6 + $0x3c] sm:$0xf]
    %v197 = vld [vmem:[%s4] sm:$0x1]
    %v199 = vlaneseq
    %v200 = vshrl.u32 %v199, 7
    %v201 = vsub.s32 0, %v200
    %v202 = vrot.slane %v197, %v201
    %v220 = vunpack.c.l.b16 %v181
    %v221 = vunpack.c.l.b16 %v182
    %v222 = vunpack.c.l.b16 %v183
    %v223 = vunpack.c.l.b16 %v184
    %v224 = vunpack.c.l.b16 %v185
    %v225 = vunpack.c.l.b16 %v186
    %v226 = vunpack.c.l.b16 %v187
    %v227 = vunpack.c.l.b16 %v188
    %v228 = vunpack.c.l.b16 %v189
    %v229 = vunpack.c.l.b16 %v190
    %v230 = vunpack.c.l.b16 %v191
    %v231 = vunpack.c.l.b16 %v192
    %v232 = vunpack.c.l.b16 %v193
    %v233 = vunpack.c.l.b16 %v194
    %v234 = vunpack.c.l.b16 %v195
    %v235 = vunpack.c.l.b16 %v196
    %v236 = vpack.c.b16 %v221, %v220
    %v237 = vpack.c.b16 %v223, %v222
    %v238 = vpack.c.b16 %v225, %v224
    %v239 = vpack.c.b16 %v227, %v226
    %v240 = vpack.c.b16 %v229, %v228
    %v241 = vpack.c.b16 %v231, %v230
    %v242 = vpack.c.b16 %v233, %v232
    %v243 = vpack.c.b16 %v235, %v234
    %252 = vmatprep.subr.bf16.mxu0 0
    %253 = vmatpush1.bf16.msra.mxu0 %v243
    %254 = vmatprep.subr.bf16.mxu0 0
    %255 = vmatpush1.bf16.msra.mxu0 %v242
    %256 = vmatprep.subr.bf16.mxu0 0
    %257 = vmatpush1.bf16.msra.mxu0 %v241
    %258 = vmatprep.subr.bf16.mxu0 0
    %259 = vmatpush1.bf16.msra.mxu0 %v240
    %260 = vmatprep.subr.bf16.mxu0 0
    %261 = vmatpush1.bf16.msra.mxu0 %v239
    %262 = vmatprep.subr.bf16.mxu0 0
    %263 = vmatpush1.bf16.msra.mxu0 %v238
    %264 = vmatprep.subr.bf16.mxu0 0
    %265 = vmatpush1.bf16.msra.mxu0 %v237
    %266 = vmatprep.subr.bf16.mxu0 0
    %267 = vmatpush1.bf16.msra.mxu0 %v236
    %268 = vmatprep.subr.bf16.mxu0 0
    %269 = vmatpush2.bf16.msra.mxu0 0
    %270 = vmatprep.subr.bf16.mxu0 0
    %271 = vmatpush2.bf16.msra.mxu0 0
    %272 = vmatprep.subr.bf16.mxu0 0
    %273 = vmatpush2.bf16.msra.mxu0 0
    %274 = vmatprep.subr.bf16.mxu0 0
    %275 = vmatpush2.bf16.msra.mxu0 0
    %276 = vmatprep.subr.bf16.mxu0 0
    %277 = vmatpush2.bf16.msra.mxu0 0
    %278 = vmatprep.subr.bf16.mxu0 0
    %279 = vmatpush2.bf16.msra.mxu0 0
    %280 = vmatprep.subr.bf16.mxu0 0
    %281 = vmatpush2.bf16.msra.mxu0 0
    %282 = vmatprep.subr.bf16.mxu0 0
    %283 = vmatpush2.bf16.msra.mxu0 0
    %284 = vmatprep.mubr.bf16.mxu0 0
    %285 = vmatmul.mubr.bf16.gmra.mxu0 %v180
    %v286 = vpop.f32.mrf.mxu0
    %v287 = vadd.f32 %v202, %v286
    %v288 = vpop.f32.mrf.mxu0
    %v289 = vpop.f32.mrf.mxu0
    %v290 = vadd.f32 %v202, %v289
    %v291 = vpop.f32.mrf.mxu0
    %292 = vdwg.mxu0
    %v293 = vmul.f32 %v287, 0.5
    %v294 = vmul.f32 %v290, 0.5
    %v295 = vtanh.pop %v293
    %v296 = vtanh.pop %v294
    %v297 = vadd.f32 %v295, 1.0
    %v298 = vadd.f32 %v296, 1.0
    %v299 = vmul.f32 %v297, 0.5
    %v300 = vmul.f32 %v298, 0.5
    %v301 = vpack.c.bf16 %v300, %v299
    %v302 = vld [vmem:[#allocation7] sm:$0xf]
    %v303 = vld [vmem:[#allocation7 + $0x4] sm:$0xf]
    %v304 = vld [vmem:[#allocation7 + $0x8] sm:$0xf]
    %v305 = vld [vmem:[#allocation7 + $0xc] sm:$0xf]
    %v306 = vld [vmem:[#allocation7 + $0x10] sm:$0xf]
    %v307 = vld [vmem:[#allocation7 + $0x14] sm:$0xf]
    %v308 = vld [vmem:[#allocation7 + $0x18] sm:$0xf]
    %v309 = vld [vmem:[#allocation7 + $0x1c] sm:$0xf]
    %v310 = vld [vmem:[#allocation7 + $0x20] sm:$0xf]
    %v311 = vld [vmem:[#allocation7 + $0x24] sm:$0xf]
    %v312 = vld [vmem:[#allocation7 + $0x28] sm:$0xf]
    %v313 = vld [vmem:[#allocation7 + $0x2c] sm:$0xf]
    %v314 = vld [vmem:[#allocation7 + $0x30] sm:$0xf]
    %v315 = vld [vmem:[#allocation7 + $0x34] sm:$0xf]
    %v316 = vld [vmem:[#allocation7 + $0x38] sm:$0xf]
    %v317 = vld [vmem:[#allocation7 + $0x3c] sm:$0xf]
    %v318 = vld [vmem:[%s6] sm:$0x1]
    %v320 = vlaneseq
    %v321 = vshrl.u32 %v320, 7
    %v322 = vsub.s32 0, %v321
    %v323 = vrot.slane %v318, %v322
    %v341 = vunpack.c.l.b16 %v302
    %v342 = vunpack.c.l.b16 %v303
    %v343 = vunpack.c.l.b16 %v304
    %v344 = vunpack.c.l.b16 %v305
    %v345 = vunpack.c.l.b16 %v306
    %v346 = vunpack.c.l.b16 %v307
    %v347 = vunpack.c.l.b16 %v308
    %v348 = vunpack.c.l.b16 %v309
    %v349 = vunpack.c.l.b16 %v310
    %v350 = vunpack.c.l.b16 %v311
    %v351 = vunpack.c.l.b16 %v312
    %v352 = vunpack.c.l.b16 %v313
    %v353 = vunpack.c.l.b16 %v314
    %v354 = vunpack.c.l.b16 %v315
    %v355 = vunpack.c.l.b16 %v316
    %v356 = vunpack.c.l.b16 %v317
    %v357 = vpack.c.b16 %v342, %v341
    %v358 = vpack.c.b16 %v344, %v343
    %v359 = vpack.c.b16 %v346, %v345
    %v360 = vpack.c.b16 %v348, %v347
    %v361 = vpack.c.b16 %v350, %v349
    %v362 = vpack.c.b16 %v352, %v351
    %v363 = vpack.c.b16 %v354, %v353
    %v364 = vpack.c.b16 %v356, %v355
    %373 = vmatprep.subr.bf16.mxu0 0
    %374 = vmatpush1.bf16.msra.mxu0 %v364
    %375 = vmatprep.subr.bf16.mxu0 0
    %376 = vmatpush1.bf16.msra.mxu0 %v363
    %377 = vmatprep.subr.bf16.mxu0 0
    %378 = vmatpush1.bf16.msra.mxu0 %v362
    %379 = vmatprep.subr.bf16.mxu0 0
    %380 = vmatpush1.bf16.msra.mxu0 %v361
    %381 = vmatprep.subr.bf16.mxu0 0
    %382 = vmatpush1.bf16.msra.mxu0 %v360
    %383 = vmatprep.subr.bf16.mxu0 0
    %384 = vmatpush1.bf16.msra.mxu0 %v359
    %385 = vmatprep.subr.bf16.mxu0 0
    %386 = vmatpush1.bf16.msra.mxu0 %v358
    %387 = vmatprep.subr.bf16.mxu0 0
    %388 = vmatpush1.bf16.msra.mxu0 %v357
    %389 = vmatprep.subr.bf16.mxu0 0
    %390 = vmatpush2.bf16.msra.mxu0 0
    %391 = vmatprep.subr.bf16.mxu0 0
    %392 = vmatpush2.bf16.msra.mxu0 0
    %393 = vmatprep.subr.bf16.mxu0 0
    %394 = vmatpush2.bf16.msra.mxu0 0
    %395 = vmatprep.subr.bf16.mxu0 0
    %396 = vmatpush2.bf16.msra.mxu0 0
    %397 = vmatprep.subr.bf16.mxu0 0
    %398 = vmatpush2.bf16.msra.mxu0 0
    %399 = vmatprep.subr.bf16.mxu0 0
    %400 = vmatpush2.bf16.msra.mxu0 0
    %401 = vmatprep.subr.bf16.mxu0 0
    %402 = vmatpush2.bf16.msra.mxu0 0
    %403 = vmatprep.subr.bf16.mxu0 0
    %404 = vmatpush2.bf16.msra.mxu0 0
    %405 = vmatprep.mubr.bf16.mxu0 0
    %406 = vmatmul.mubr.bf16.gmra.mxu0 %v301
    %v407 = vpop.f32.mrf.mxu0
    %v408 = vadd.f32 %v323, %v407
    %v409 = vpop.f32.mrf.mxu0
    %v410 = vpop.f32.mrf.mxu0
    %v411 = vadd.f32 %v323, %v410
    %v412 = vpop.f32.mrf.mxu0
    %413 = vdwg.mxu0
    %v414 = vmul.f32 %v408, 0.5
    %v415 = vmul.f32 %v411, 0.5
    %v416 = vtanh.pop %v414
    %v417 = vtanh.pop %v415
    %v418 = vadd.f32 %v416, 1.0
    %v419 = vadd.f32 %v417, 1.0
    %v420 = vmul.f32 %v418, 0.5
    %v421 = vmul.f32 %v419, 0.5
    %v422 = vpack.c.bf16 %v421, %v420
    %v423 = vld [vmem:[#allocation9] sm:$0xf]
    %v424 = vld [vmem:[#allocation9 + $0x4] sm:$0xf]
    %v425 = vld [vmem:[#allocation9 + $0x8] sm:$0xf]
    %v426 = vld [vmem:[#allocation9 + $0xc] sm:$0xf]
    %v427 = vld [vmem:[#allocation9 + $0x10] sm:$0xf]
    %v428 = vld [vmem:[#allocation9 + $0x14] sm:$0xf]
    %v429 = vld [vmem:[#allocation9 + $0x18] sm:$0xf]
    %v430 = vld [vmem:[#allocation9 + $0x1c] sm:$0xf]
    %v431 = vld [vmem:[#allocation9 + $0x20] sm:$0xf]
    %v432 = vld [vmem:[#allocation9 + $0x24] sm:$0xf]
    %v433 = vld [vmem:[#allocation9 + $0x28] sm:$0xf]
    %v434 = vld [vmem:[#allocation9 + $0x2c] sm:$0xf]
    %v435 = vld [vmem:[#allocation9 + $0x30] sm:$0xf]
    %v436 = vld [vmem:[#allocation9 + $0x34] sm:$0xf]
    %v437 = vld [vmem:[#allocation9 + $0x38] sm:$0xf]
    %v438 = vld [vmem:[#allocation9 + $0x3c] sm:$0xf]
    %v439 = vld [vmem:[%s8] sm:$0x1]
    %v441 = vlaneseq
    %v442 = vshrl.u32 %v441, 7
    %v443 = vsub.s32 0, %v442
    %v444 = vrot.slane %v439, %v443
    %v462 = vunpack.c.l.b16 %v423
    %v463 = vunpack.c.l.b16 %v424
    %v464 = vunpack.c.l.b16 %v425
    %v465 = vunpack.c.l.b16 %v426
    %v466 = vunpack.c.l.b16 %v427
    %v467 = vunpack.c.l.b16 %v428
    %v468 = vunpack.c.l.b16 %v429
    %v469 = vunpack.c.l.b16 %v430
    %v470 = vunpack.c.l.b16 %v431
    %v471 = vunpack.c.l.b16 %v432
    %v472 = vunpack.c.l.b16 %v433
    %v473 = vunpack.c.l.b16 %v434
    %v474 = vunpack.c.l.b16 %v435
    %v475 = vunpack.c.l.b16 %v436
    %v476 = vunpack.c.l.b16 %v437
    %v477 = vunpack.c.l.b16 %v438
    %v478 = vpack.c.b16 %v463, %v462
    %v479 = vpack.c.b16 %v465, %v464
    %v480 = vpack.c.b16 %v467, %v466
    %v481 = vpack.c.b16 %v469, %v468
    %v482 = vpack.c.b16 %v471, %v470
    %v483 = vpack.c.b16 %v473, %v472
    %v484 = vpack.c.b16 %v475, %v474
    %v485 = vpack.c.b16 %v477, %v476
    %494 = vmatprep.subr.bf16.mxu0 0
    %495 = vmatpush1.bf16.msra.mxu0 %v485
    %496 = vmatprep.subr.bf16.mxu0 0
    %497 = vmatpush1.bf16.msra.mxu0 %v484
    %498 = vmatprep.subr.bf16.mxu0 0
    %499 = vmatpush1.bf16.msra.mxu0 %v483
    %500 = vmatprep.subr.bf16.mxu0 0
    %501 = vmatpush1.bf16.msra.mxu0 %v482
    %502 = vmatprep.subr.bf16.mxu0 0
    %503 = vmatpush1.bf16.msra.mxu0 %v481
    %504 = vmatprep.subr.bf16.mxu0 0
    %505 = vmatpush1.bf16.msra.mxu0 %v480
    %506 = vmatprep.subr.bf16.mxu0 0
    %507 = vmatpush1.bf16.msra.mxu0 %v479
    %508 = vmatprep.subr.bf16.mxu0 0
    %509 = vmatpush1.bf16.msra.mxu0 %v478
    %510 = vmatprep.subr.bf16.mxu0 0
    %511 = vmatpush2.bf16.msra.mxu0 0
    %512 = vmatprep.subr.bf16.mxu0 0
    %513 = vmatpush2.bf16.msra.mxu0 0
    %514 = vmatprep.subr.bf16.mxu0 0
    %515 = vmatpush2.bf16.msra.mxu0 0
    %516 = vmatprep.subr.bf16.mxu0 0
    %517 = vmatpush2.bf16.msra.mxu0 0
    %518 = vmatprep.subr.bf16.mxu0 0
    %519 = vmatpush2.bf16.msra.mxu0 0
    %520 = vmatprep.subr.bf16.mxu0 0
    %521 = vmatpush2.bf16.msra.mxu0 0
    %522 = vmatprep.subr.bf16.mxu0 0
    %523 = vmatpush2.bf16.msra.mxu0 0
    %524 = vmatprep.subr.bf16.mxu0 0
    %525 = vmatpush2.bf16.msra.mxu0 0
    %526 = vmatprep.mubr.bf16.mxu0 0
    %527 = vmatmul.mubr.bf16.gmra.mxu0 %v422
    %v528 = vpop.f32.mrf.mxu0
    %v529 = vadd.f32 %v444, %v528
    %v530 = vpop.f32.mrf.mxu0
    %v531 = vpop.f32.mrf.mxu0
    %v532 = vadd.f32 %v444, %v531
    %v533 = vpop.f32.mrf.mxu0
    %534 = vdwg.mxu0
    %535 = vmax.xlane.f32.xlu0 %v529
    %v536 = vpop.xlane.xlu0 %535
    %537 = vmax.xlane.f32.xlu0 %v532
    %v538 = vpop.xlane.xlu0 %537
    %v539 = vsub.f32 %v529, %v536
    %v540 = vsub.f32 %v532, %v538
    %v541 = vmul.f32 %v539, 1.442695
    %v542 = vpow.pop %v541
    %v543 = vmul.f32 %v540, 1.442695
    %v544 = vpow.pop %v543
    %545 = vadd.xlane.f32.xlu0 %v542
    %v546 = vpop.xlane.xlu0 %545
    %547 = vadd.xlane.f32.xlu0 %v544
    %v548 = vpop.xlane.xlu0 %547
    %v549 = vrcp.pop %v546
    %v550 = vrcp.pop %v548
    %v551 = vmul.f32 %v542, %v549
    %v552 = vmul.f32 %v544, %v550
    %vm553 = vcmask 15360
    %554 = vst.msk [vmem:[%s9] sm:$0xff] %vm553, %v551
    %555 = vst.msk [vmem:[%s9 + $0x8] sm:$0xff] %vm553, %v552
    // Predicated region
    $region58: #{tpu_custom_call.1} parent=1 // pred_check
      _
    $region59: #{tpu_custom_call.1} parent=1 // pred_check_branch
      %557 = sbr.rel (0) target = $region61
    $region60: #{tpu_custom_call.1} parent=1 // pred_region
      _
    $region61: #{tpu_custom_call.1} parent=1 // pred_fallthru
      _
    // Predicated region
    $region62: #{tpu_custom_call.1} parent=1 // pred_check
      _
    $region63: #{tpu_custom_call.1} parent=1 // pred_check_branch
      %559 = sbr.rel (0) target = $region65
    $region64: #{tpu_custom_call.1} parent=1 // pred_region
      _
    $region65: #{tpu_custom_call.1} parent=1 // pred_fallthru
      _
    %560 = vsyncpa [#allocation3], 1
    %561 = vsyncpa [#allocation5], 1
    %562 = vsyncpa [#allocation8], 1

</llo_original>
